<compile_context>
chip_gen: v5e
topology: v5e:2x2
jax: 0.10.0
libtpu: 0.0.40
codegen_flags: <defaults>
</compile_context>

<pallas_src>
import jax
import jax.numpy as jnp
from jax.experimental import pallas as pl
from jax.experimental.pallas import tpu as pltpu

EPS = 1e-10


def _l2norm_kernel(x_ref, o_ref):
    xf = x_ref[...].astype(jnp.float32)               # f32 accumulate
    ssq = jnp.sum(xf * xf, axis=1, keepdims=True)     # (TB, 1)
    inv_norm = jax.lax.rsqrt(ssq + EPS)               # EUP rsqrt
    o_ref[...] = (xf * inv_norm).astype(o_ref.dtype)  # scale in f32, cast once


def _chip_config():
    """Per-generation tile/VMEM budgets (fail-safe defaults if query fails)."""
    vmem_bytes = 128 * 1024 * 1024
    try:
        info = pltpu.get_tpu_info()
        vmem_bytes = int(getattr(info, "vmem_capacity_bytes", vmem_bytes))
    except Exception:
        pass
    if vmem_bytes <= 64 * 1024 * 1024:
        # v7x-class: 64 MiB VMEM per TC, 2 TCs/chip. Keep the 4-buffer
        # double-buffered working set (+ f32 temporaries) well under VMEM.
        return {"per_buffer": 4 * 1024 * 1024,
                "vmem_limit": 44 * 1024 * 1024,
                "num_cores": 2}
    # v5e / v6e: 128 MiB physical VMEM, 1 TC/chip. Explicitly raise the
    # scoped limit (v5e's default is only 16 MiB).
    return {"per_buffer": 8 * 1024 * 1024,
            "vmem_limit": 64 * 1024 * 1024,
            "num_cores": 1}


def _pick_block_b(B, D, dtype, per_buffer_bytes, num_cores):
    itemsize = jnp.dtype(dtype).itemsize
    sub = {4: 8, 2: 16, 1: 32}.get(itemsize, 8)        # sublane alignment
    row_bytes = D * itemsize
    rows_by_budget = max(sub, (per_buffer_bytes // row_bytes) // sub * sub)

    if rows_by_budget >= B:
        bb = B                      # whole batch in one block (full-dim block)
    else:
        bb = rows_by_budget         # sublane-aligned; last block may be partial

    if num_cores > 1 and B >= 2 * sub:
        # Keep the grid step count even (and >= 2) so the "parallel" batch
        # axis splits evenly across TensorCores.
        steps = pl.cdiv(B, bb)
        target = steps
        while steps % 2 == 1 and bb > sub:
            target += 1
            bb = max(sub, pl.cdiv(pl.cdiv(B, target), sub) * sub)
            steps = pl.cdiv(B, bb)
    return bb


def l2norm(x, *, block_b=None):
    """Row-wise L2 normalization of a (B, D) array (PyTorch L2Norm)."""
    B, D = x.shape
    cfg = _chip_config()
    bb = _pick_block_b(B, D, x.dtype, cfg["per_buffer"], cfg["num_cores"]) \
        if block_b is None else block_b

    # TODO(synk): if D grows so large that bb falls below ~8-16 rows, add a
    # second "arbitrary" grid axis over D with an ssq accumulator; for D up to
    # tens of thousands the 1-D grid with full-D blocks is already at roofline.
    return pl.pallas_call(
        _l2norm_kernel,
        out_shape=jax.ShapeDtypeStruct((B, D), x.dtype),
        grid=(pl.cdiv(B, bb),),
        in_specs=[pl.BlockSpec((bb, D), lambda i: (i, 0))],
        out_specs=pl.BlockSpec((bb, D), lambda i: (i, 0)),
        compiler_params=pltpu.CompilerParams(
            dimension_semantics=("parallel",),
            vmem_limit_bytes=cfg["vmem_limit"],
        ),
    )(x)


def _reference(x):
    xf = x.astype(jnp.float32)
    norm = jnp.sqrt(jnp.sum(xf * xf, axis=1) + EPS)
    return (xf / norm[:, None]).astype(x.dtype)


if __name__ == "__main__":
    key = jax.random.PRNGKey(0)
    k1, k2, k3 = jax.random.split(key, 3)

    D = 128  # L2-Net-style 128-dim descriptors

    # Case 1: f32, ragged batch (exercises the partial last block / masked
    # store path — no wrapper-side padding or slicing anymore).
    B1 = 10
    x1 = jax.random.normal(k1, (B1, D), dtype=jnp.float32)
    out1 = jax.block_until_ready(l2norm(x1))
    ref1 = _reference(x1)
    assert out1.shape == (B1, D) and out1.dtype == x1.dtype
    assert jnp.allclose(out1, ref1, atol=1e-5, rtol=1e-5)

    # Case 2: bf16 path (f32 accumulate + f32 scale, single cast at the store).
    B2 = 32
    x2 = jax.random.normal(k2, (B2, D), dtype=jnp.bfloat16)
    out2 = jax.block_until_ready(l2norm(x2))
    ref2 = _reference(x2)
    assert out2.shape == (B2, D) and out2.dtype == x2.dtype
    assert jnp.allclose(out2.astype(jnp.float32), ref2.astype(jnp.float32),
                        atol=2e-2, rtol=2e-2)

    # Case 3: batch larger than one sublane tile, not a multiple of the block.
    B3 = 200
    x3 = jax.random.normal(k3, (B3, D), dtype=jnp.float32)
    out3 = jax.block_until_ready(l2norm(x3, block_b=64))
    ref3 = _reference(x3)
    assert jnp.allclose(out3, ref3, atol=1e-5, rtol=1e-5)

    print("KERNEL_OK")
</pallas_src>

<mosaic_0001>
module attributes {stable_mosaic.version = 11 : i64} {
  func.func @_l2norm_kernel(%arg0: i32, %arg1: memref<10x128xf32, #tpu.memory_space<vmem>>, %arg2: memref<10x128xf32, #tpu.memory_space<vmem>>) attributes {dimension_semantics = [#tpu.dimension_semantics<parallel>], iteration_bounds = array<i64: 1>, scalar_prefetch = 0 : i64, scratch_operands = 0 : i64, tpu.core_type = #tpu.core_type<tc>, window_params = [{transform_indices = @transform_0, window_bounds = array<i64: 10, 128>}, {transform_indices = @transform_1, window_bounds = array<i64: 10, 128>}]} {
    %c0 = arith.constant 0 : index
    %c0_0 = arith.constant 0 : index
    %0 = vector.load %arg1[%c0, %c0_0] : memref<10x128xf32, #tpu.memory_space<vmem>>, vector<10x128xf32>
    %1 = arith.mulf %0, %0 : vector<10x128xf32>
    %cst = arith.constant dense<0.000000e+00> : vector<10xf32>
    %2 = vector.multi_reduction <add>, %1, %cst [1] : vector<10x128xf32> to vector<10xf32>
    %3 = vector.shape_cast %2 : vector<10xf32> to vector<10x1xf32>
    %cst_1 = arith.constant 1.000000e-10 : f32
    %4 = vector.broadcast %cst_1 : f32 to vector<10x1xf32>
    %5 = arith.addf %3, %4 : vector<10x1xf32>
    %6 = math.rsqrt %5 : vector<10x1xf32>
    %7 = vector.broadcast %6 : vector<10x1xf32> to vector<10x128xf32>
    %8 = arith.mulf %0, %7 : vector<10x128xf32>
    %c0_2 = arith.constant 0 : index
    %c0_3 = arith.constant 0 : index
    %9 = vector.load %arg2[%c0_2, %c0_3] : memref<10x128xf32, #tpu.memory_space<vmem>>, vector<10x128xf32>
    tpu.vector_store %arg2[%c0_2, %c0_3], %8 {strides = array<i32>} : memref<10x128xf32, #tpu.memory_space<vmem>>, vector<10x128xf32>,
    return
  }
  func.func @transform_0(%arg0: i32) -> (i32, i32) {
    %c0_i32 = arith.constant 0 : i32
    %c0_i32_0 = arith.constant 0 : i32
    return %arg0, %c0_i32 : i32, i32
  }
  func.func @transform_1(%arg0: i32) -> (i32, i32) {
    %c0_i32 = arith.constant 0 : i32
    %c0_i32_0 = arith.constant 0 : i32
    return %arg0, %c0_i32 : i32, i32
  }
}

</mosaic_0001>

<llo_original>
// kernel: tpu_custom_call.1
$region0: #{tpu_custom_call.1}
  #allocation0 [shape = 'u32[]', space=smem, size = 0x4, offset = 0x4, fixed_abs, tag = 'smem constant byte address 0x4 - core index']
  #allocation1 [shape = 'u32[72,128]{1,0:T(1,128)}', space=vmem, size = 0x9000, scoped, tag = 'internal scratch']
  %s0 = inlined_call_operand.hbm [shape: f32[10,128], index: 0, kind: input, shape index: {}]
  %s1 = inlined_call_operand.hbm [shape: f32[10,128], index: 1, kind: output, shape index: {}]
  %s2 = sld [smem:[#allocation0]]
  $region18: #{tpu_custom_call.1} parent=0
    _
  %s4 = ssub.s32 1, %s2
  %s5 = scalar_select 0, %s4, %s2
  $region1: #{tpu_custom_call.1} parent=0
    #allocation2 [shape = 'u8[8192]{0}', space=vmem, size = 0x2000, scoped, tag = 'input window, operand 0, single buffered']
    #allocation3 [shape = 's32[1]{0}', space=sflag, size = 0x4, scoped, tag = 'scoped memory for tpu_custom_call.1']
    #allocation4 [shape = 's32[1]{0}', space=sflag, size = 0x4, scoped, tag = 'scoped memory for tpu_custom_call.1']
    #allocation5 [shape = 'u8[8192]{0}', space=vmem, size = 0x2000, scoped, tag = 'output window, operand 0, single buffered']
    %6 = vsyncpa [#allocation3], 0
    %7 = vsyncpa [#allocation4], 0
    // Predicated region
    $region2: #{tpu_custom_call.1} parent=1 // pred_check
      _
    $region3: #{tpu_custom_call.1} parent=1 // pred_check_branch
      %9 = sbr.rel (0) target = $region5
    $region4: #{tpu_custom_call.1} parent=1 // pred_region
      %11 = vsyncadd [#allocation3], 0
      %s12 = sshll.u32 %s0, 4
      %s13 = int_to_ptr.hbm [resolvable:$true] %s12
      %s14 = sshll.u32 [#allocation2], 4
      %s15 = int_to_ptr.vmem [resolvable:$true] %s14
      %20 = dma.hbm_to_vmem [thread:$0]  %s13, 256, %s15, [#allocation3], 128, 128, 8
    $region5: #{tpu_custom_call.1} parent=1 // pred_fallthru
      _
    // Predicated region
    $region6: #{tpu_custom_call.1} parent=1 // pred_check
      _
    $region7: #{tpu_custom_call.1} parent=1 // pred_check_branch
      %22 = sbr.rel (0) target = $region9
    $region8: #{tpu_custom_call.1} parent=1 // pred_region
      %24 = dma.done [#allocation3], 256
    $region9: #{tpu_custom_call.1} parent=1 // pred_fallthru
      _
    %v25 = vld [vmem:[#allocation2] sm:$0xff]
    %v26 = vld [vmem:[#allocation2 + $0x8] sm:$0x3]
    %v27 = vmul.f32 %v25, %v25
    %v28 = vmul.f32 %v26, %v26
    %29 = vadd.xlane.f32.xlu0 %v27
    %v30 = vpop.xlane.xlu0 %29
    %vm31 = vcmask 1041408
    %v32 = vsel %vm31, %v28, 0.0
    %33 = vadd.xlane.f32.xlu0 %v32
    %v34 = vpop.xlane.xlu0 %33
    %v35 = vadd.f32 %v30, 1e-10
    %v36 = vadd.f32 %v34, 1e-10
    %v37 = vrsqrt.pop %v35
    %v38 = vmul.f32 %v37, %v35
    %v39 = vmul.f32 %v38, %v37
    %v40 = vmul.f32 0.5, %v39
    %v41 = vsub.f32 1.5, %v40
    %v42 = vmul.f32 %v37, %v41
    %vm43 = vweird.f32 %v35
    %vm44 = vweird.f32 %v37
    %vm45 = vmor %vm43, %vm44
    %v46 = vsel %vm45, %v37, %v42
    %v47 = vrsqrt.pop %v36
    %v48 = vmul.f32 %v47, %v36
    %v49 = vmul.f32 %v48, %v47
    %v50 = vmul.f32 0.5, %v49
    %v51 = vsub.f32 1.5, %v50
    %v52 = vmul.f32 %v47, %v51
    %vm53 = vweird.f32 %v36
    %vm54 = vweird.f32 %v47
    %vm55 = vmor %vm53, %vm54
    %v56 = vsel %vm55, %v47, %v52
    %v57 = vmul.f32 %v25, %v46
    %v58 = vmul.f32 %v26, %v56
    %59 = vst [vmem:[#allocation5] sm:$0xff] %v57
    %60 = vst [vmem:[#allocation5 + $0x8] sm:$0x3] %v58
    // Predicated region
    $region10: #{tpu_custom_call.1} parent=1 // pred_check
      _
    $region11: #{tpu_custom_call.1} parent=1 // pred_check_branch
      %62 = sbr.rel (0) target = $region13
    $region12: #{tpu_custom_call.1} parent=1 // pred_region
      %64 = vsyncadd [#allocation4], 0
      %s65 = sshll.u32 [#allocation5], 4
      %s66 = int_to_ptr.vmem [resolvable:$true] %s65
      %s67 = sshll.u32 %s1, 4
      %s68 = int_to_ptr.hbm [resolvable:$true] %s67
      %73 = dma.vmem_to_hbm [thread:$0]  %s66, 256, %s68, [#allocation4], 128, 128, 8
    $region13: #{tpu_custom_call.1} parent=1 // pred_fallthru
      _
    // Predicated region
    $region14: #{tpu_custom_call.1} parent=1 // pred_check
      _
    $region15: #{tpu_custom_call.1} parent=1 // pred_check_branch
      %75 = sbr.rel (0) target = $region17
    $region16: #{tpu_custom_call.1} parent=1 // pred_region
      %77 = dma.done [#allocation4], 256
    $region17: #{tpu_custom_call.1} parent=1 // pred_fallthru
      _
    %78 = vsyncpa [#allocation3], 1
    %79 = vsyncpa [#allocation4], 1

</llo_original>
